<compile_context>
chip_gen: v5e
topology: v5e:2x2
jax: 0.10.0
libtpu: 0.0.40
codegen_flags: <defaults>
</compile_context>

<pallas_src>
import math

import jax
import jax.numpy as jnp
from jax.experimental import pallas as pl
from jax.experimental.pallas import tpu as pltpu


def build_pe_table(d_model: int, max_len: int = 5000) -> jnp.ndarray:
    """Deterministic sinusoidal table, shape (1, max_len, d_model), float32.

    Built once at module init (mirrors PyTorch's register_buffer)."""
    position = jnp.arange(0, max_len, dtype=jnp.float32)[:, None]            # (L, 1)
    div_term = jnp.exp(
        jnp.arange(0, d_model, 2, dtype=jnp.float32) * (-math.log(10000.0) / d_model)
    )                                                                         # (ceil(D/2),)
    angles = position * div_term                                              # (L, ceil(D/2))
    pe = jnp.zeros((max_len, d_model), dtype=jnp.float32)
    pe = pe.at[:, 0::2].set(jnp.sin(angles))
    pe = pe.at[:, 1::2].set(jnp.cos(angles)[:, : d_model // 2])
    return pe[None, :, :]                                                     # (1, L, D)


def _add_pe_kernel(x_ref, pe_ref, o_ref):
    # x_ref: (B, R, D) in x.dtype, pe_ref: (1, R, D) f32, o_ref: (B, R, D).
    # Add in f32 (matches PyTorch's f32 buffer), downcast on store.  The
    # (1, R, D) pe tile broadcasts over batch — pure VPU work, free in this
    # HBM-bound kernel.
    x = x_ref[...].astype(jnp.float32)
    o_ref[...] = (x + pe_ref[...]).astype(o_ref.dtype)


def _vmem_capacity_bytes() -> int:
    """Per-core VMEM capacity; conservative fallback if the query fails."""
    try:
        info = pltpu.get_tpu_info()
        for attr in ("vmem_capacity_bytes", "vmem_size_bytes", "vmem_bytes"):
            v = getattr(info, attr, None)
            if v:
                return int(v)
    except Exception:
        pass
    return 64 * 1024 * 1024  # v7x per-TC size — safe lower bound everywhere


def positional_encoding(x: jnp.ndarray, pe_table: jnp.ndarray,
                        *, donate_x: bool = False) -> jnp.ndarray:
    """x: (B, T, D); pe_table: (1, max_len, D) float32.  Returns x + pe[:, :T, :]."""
    B, T, D = x.shape
    _, max_len, d_model = pe_table.shape
    assert D == d_model, f"d_model mismatch: x has {D}, pe table has {d_model}"
    assert T <= max_len, f"time_steps ({T}) exceeds max_len ({max_len})"

    itemsize = jnp.dtype(x.dtype).itemsize
    d_pad = pl.cdiv(D, 128) * 128              # padded lane footprint in VMEM
    row_align = max(8, 32 // itemsize)         # sublane multiple: 8 f32, 16 bf16

    # --- Generation-aware VMEM budget -------------------------------------
    vmem_cap = _vmem_capacity_bytes()
    # ~75% of physical VMEM, capped at 96 MiB (v5e/v6e have 128 MiB, v7x 64).
    vmem_limit = min(int(vmem_cap * 3 // 4), 96 * 1024 * 1024)

    # Padded per-T-row footprint of one pipeline stage: x + out (x.dtype) + pe (f32),
    # all double-buffered by the default BlockSpec pipeline.
    per_row_bytes = 2 * B * d_pad * itemsize + d_pad * 4
    block_budget = int(vmem_limit * 0.85)      # headroom for sems/scratch
    r_budget = max(row_align, (block_budget // (2 * per_row_bytes) // row_align) * row_align)

    rows = min(r_budget, T)
    if rows >= T:
        rows = T                               # single block == full array dims (valid)
        if T >= 2 * row_align:
            # Keep >= 2 grid steps so the "parallel" axis can shard across
            # v7x's 2 TensorCores (no-op on v5e/v6e).
            rows = max(row_align, ((T // 2) // row_align) * row_align)
    num_tiles = pl.cdiv(T, rows)

    extra = {"input_output_aliases": {0: 0}} if donate_x else {}

    out = pl.pallas_call(
        _add_pe_kernel,
        out_shape=jax.ShapeDtypeStruct((B, T, D), x.dtype),
        grid_spec=pltpu.PrefetchScalarGridSpec(
            num_scalar_prefetch=0,
            grid=(num_tiles,),
            in_specs=[
                pl.BlockSpec((B, rows, D), lambda t: (0, t, 0)),   # x tile
                pl.BlockSpec((1, rows, D), lambda t: (0, t, 0)),   # pe tile (read once)
            ],
            out_specs=pl.BlockSpec((B, rows, D), lambda t: (0, t, 0)),
        ),
        compiler_params=pltpu.CompilerParams(
            dimension_semantics=("parallel",),
            vmem_limit_bytes=vmem_limit,
        ),
        **extra,
    )(x, pe_table)

    return out


if __name__ == "__main__":
    B, T, D = 2, 8, 32
    max_len = 64  # small synthetic table (>= T)

    key = jax.random.PRNGKey(0)
    x = jax.random.normal(key, (B, T, D), dtype=jnp.float32)

    pe_table = build_pe_table(D, max_len=max_len)   # (1, max_len, D), f32

    out = positional_encoding(x, pe_table)
    out = jax.block_until_ready(out)

    # Reference check against plain JAX semantics of the PyTorch forward.
    ref = x + pe_table[:, :T, :]
    assert out.shape == (B, T, D)
    assert jnp.allclose(out, ref, atol=1e-6), "mismatch vs reference"

    print("KERNEL_OK")
</pallas_src>

<mosaic_0001>
module attributes {stable_mosaic.version = 11 : i64} {
  func.func @_add_pe_kernel(%arg0: i32, %arg1: memref<2x8x32xf32, #tpu.memory_space<vmem>>, %arg2: memref<1x8x32xf32, #tpu.memory_space<vmem>>, %arg3: memref<2x8x32xf32, #tpu.memory_space<vmem>>) attributes {dimension_semantics = [#tpu.dimension_semantics<parallel>], iteration_bounds = array<i64: 1>, scalar_prefetch = 0 : i64, scratch_operands = 0 : i64, tpu.core_type = #tpu.core_type<tc>, window_params = [{transform_indices = @transform_0, window_bounds = array<i64: 2, 8, 32>}, {transform_indices = @transform_1, window_bounds = array<i64: 1, 8, 32>}, {transform_indices = @transform_2, window_bounds = array<i64: 2, 8, 32>}]} {
    %c0 = arith.constant 0 : index
    %c0_0 = arith.constant 0 : index
    %c0_1 = arith.constant 0 : index
    %0 = vector.load %arg1[%c0, %c0_0, %c0_1] : memref<2x8x32xf32, #tpu.memory_space<vmem>>, vector<2x8x32xf32>
    %c0_2 = arith.constant 0 : index
    %c0_3 = arith.constant 0 : index
    %c0_4 = arith.constant 0 : index
    %1 = vector.load %arg2[%c0_2, %c0_3, %c0_4] : memref<1x8x32xf32, #tpu.memory_space<vmem>>, vector<1x8x32xf32>
    %2 = vector.broadcast %1 : vector<1x8x32xf32> to vector<2x8x32xf32>
    %3 = arith.addf %0, %2 : vector<2x8x32xf32>
    %c0_5 = arith.constant 0 : index
    %c0_6 = arith.constant 0 : index
    %c0_7 = arith.constant 0 : index
    %4 = vector.load %arg3[%c0_5, %c0_6, %c0_7] : memref<2x8x32xf32, #tpu.memory_space<vmem>>, vector<2x8x32xf32>
    tpu.vector_store %arg3[%c0_5, %c0_6, %c0_7], %3 {strides = array<i32>} : memref<2x8x32xf32, #tpu.memory_space<vmem>>, vector<2x8x32xf32>,
    return
  }
  func.func @transform_0(%arg0: i32) -> (i32, i32, i32) {
    %c0_i32 = arith.constant 0 : i32
    %c0_i32_0 = arith.constant 0 : i32
    %c0_i32_1 = arith.constant 0 : i32
    return %c0_i32, %arg0, %c0_i32_0 : i32, i32, i32
  }
  func.func @transform_1(%arg0: i32) -> (i32, i32, i32) {
    %c0_i32 = arith.constant 0 : i32
    %c0_i32_0 = arith.constant 0 : i32
    %c0_i32_1 = arith.constant 0 : i32
    return %c0_i32, %arg0, %c0_i32_0 : i32, i32, i32
  }
  func.func @transform_2(%arg0: i32) -> (i32, i32, i32) {
    %c0_i32 = arith.constant 0 : i32
    %c0_i32_0 = arith.constant 0 : i32
    %c0_i32_1 = arith.constant 0 : i32
    return %c0_i32, %arg0, %c0_i32_0 : i32, i32, i32
  }
}

</mosaic_0001>

<llo_original>
// kernel: tpu_custom_call.1
$region0: #{tpu_custom_call.1}
  #allocation0 [shape = 'u32[]', space=smem, size = 0x4, offset = 0x4, fixed_abs, tag = 'smem constant byte address 0x4 - core index']
  #allocation1 [shape = 'u32[72,128]{1,0:T(1,128)}', space=vmem, size = 0x9000, scoped, tag = 'internal scratch']
  %s0 = inlined_call_operand.vmem [shape: f32[2,8,32], index: 0, kind: input, shape index: {}]
  %s1 = inlined_call_operand.vmem [shape: f32[1,64,32], index: 1, kind: input, shape index: {}]
  %s2 = inlined_call_operand.hbm [shape: f32[2,8,32], index: 2, kind: output, shape index: {}]
  %s3 = sld [smem:[#allocation0]]
  $region18: #{tpu_custom_call.1} parent=0
    _
  %s5 = ssub.s32 1, %s3
  %s6 = scalar_select 0, %s5, %s3
  $region1: #{tpu_custom_call.1} parent=0
    #allocation2 [shape = 'u8[8192]{0}', space=vmem, size = 0x2000, scoped, tag = 'output window, operand 0, single buffered']
    #allocation3 [shape = 's32[1]{0}', space=sflag, size = 0x4, scoped, tag = 'scoped memory for tpu_custom_call.1']
    %7 = vsyncpa [#allocation3], 0
    // Predicated region
    $region2: #{tpu_custom_call.1} parent=1 // pred_check
      _
    $region3: #{tpu_custom_call.1} parent=1 // pred_check_branch
      %9 = sbr.rel (0) target = $region5
    $region4: #{tpu_custom_call.1} parent=1 // pred_region
      _
    $region5: #{tpu_custom_call.1} parent=1 // pred_fallthru
      _
    // Predicated region
    $region6: #{tpu_custom_call.1} parent=1 // pred_check
      _
    $region7: #{tpu_custom_call.1} parent=1 // pred_check_branch
      %11 = sbr.rel (0) target = $region9
    $region8: #{tpu_custom_call.1} parent=1 // pred_region
      _
    $region9: #{tpu_custom_call.1} parent=1 // pred_fallthru
      _
    %v12 = vld [vmem:[%s0] sm:$0xff]
    %v13 = vld [vmem:[%s0 + $0x8] sm:$0xff]
    %v14 = vld [vmem:[%s1] sm:$0xff]
    %v15 = vadd.f32 %v12, %v14
    %v16 = vadd.f32 %v13, %v14
    %vm17 = vcmask 261120
    %18 = vst.msk [vmem:[#allocation2] sm:$0xff] %vm17, %v15
    %19 = vst.msk [vmem:[#allocation2 + $0x8] sm:$0xff] %vm17, %v16
    // Predicated region
    $region10: #{tpu_custom_call.1} parent=1 // pred_check
      _
    $region11: #{tpu_custom_call.1} parent=1 // pred_check_branch
      %21 = sbr.rel (0) target = $region13
    $region12: #{tpu_custom_call.1} parent=1 // pred_region
      %23 = vsyncadd [#allocation3], 0
      %s24 = sshll.u32 [#allocation2], 4
      %s25 = int_to_ptr.vmem [resolvable:$true] %s24
      %s26 = sshll.u32 %s2, 4
      %s27 = int_to_ptr.hbm [resolvable:$true] %s26
      %32 = dma.vmem_to_hbm [thread:$0]  %s25, 256, %s27, [#allocation3], 128, 128, 8
    $region13: #{tpu_custom_call.1} parent=1 // pred_fallthru
      _
    // Predicated region
    $region14: #{tpu_custom_call.1} parent=1 // pred_check
      _
    $region15: #{tpu_custom_call.1} parent=1 // pred_check_branch
      %34 = sbr.rel (0) target = $region17
    $region16: #{tpu_custom_call.1} parent=1 // pred_region
      %36 = dma.done [#allocation3], 256
    $region17: #{tpu_custom_call.1} parent=1 // pred_fallthru
      _
    %37 = vsyncpa [#allocation3], 1

</llo_original>
